<compile_context>
chip_gen: v6e
topology: v6e:2x2x1
jax: 0.10.0
libtpu: 0.0.40
codegen_flags: <defaults>
</compile_context>

<pallas_src>
import jax
import jax.numpy as jnp
from jax import lax
from jax.experimental import pallas as pl
from jax.experimental.pallas import tpu as pltpu


def _round_up(x, m):
    return ((x + m - 1) // m) * m


def _vmem_block_bytes(shape, dtype):
    """Bytes of one VMEM buffer for `shape`, including sublane/lane padding."""
    itemsize = jnp.dtype(dtype).itemsize
    sublane = {1: 32, 2: 16, 4: 8}[itemsize]
    rows = shape[-2] if len(shape) >= 2 else 1
    lead = 1
    for d in shape[:-2]:
        lead *= d
    return lead * _round_up(rows, sublane) * _round_up(shape[-1], 128) * itemsize


def critic_kernel(x_ref, w1_ref, b1_ref, w2_ref, b2_ref, w3_ref, b3_ref, o_ref):
    # (TB, F) observation tile, in its native dtype (f32 or bf16); the batch
    # stays on the lane / MXU-N axis via a transposed-rhs contraction, so no
    # x.T is materialized and no whole-tile upcast is issued.
    x = x_ref[...]                                                     # (TB, F)
    # fc1 + relu: (H, F) . (TB, F)^T -> (H, TB)  (NT matmul, MXU handles it)
    h = lax.dot_general(w1_ref[...], x, (((1,), (1,)), ((), ())),
                        preferred_element_type=jnp.float32)
    h = jnp.maximum(h + b1_ref[...], 0.0)
    # fc2 + relu: (H, H) @ (H, TB) -> (H, TB)
    h = jnp.dot(w2_ref[...], h, preferred_element_type=jnp.float32)
    h = jnp.maximum(h + b2_ref[...], 0.0)
    # output_layer: (1, H) @ (H, TB) -> (1, TB), lane-dense unmasked store.
    v = jnp.dot(w3_ref[...], h, preferred_element_type=jnp.float32)
    o_ref[...] = (v + b3_ref[...]).astype(o_ref.dtype)


def critic_forward(ob, params, *, max_batch_tile=8192):
    """ob: [B, ob_space] (f32 or bf16).  Returns [B, 1] f32 state values.

    Note: with bf16 observations, fc1 runs in bf16 on the MXU (f32
    accumulation); outputs differ from the f32 path at ~1e-3 level.
    """
    B, F = ob.shape
    H = params["fc1_w"].shape[0]
    itemsize = jnp.dtype(ob.dtype).itemsize

    # ---- batch-tile selection (always a multiple of 128 lanes) ----
    # Cap TB so the double-buffered, 128-lane-padded obs block stays <= ~8 MiB
    # (comfortable under the v5e 16 MiB / v6e+v7x 32 MiB scoped-VMEM defaults).
    lane_f = _round_up(F, 128)
    vmem_cap_tb = max(128, ((8 << 20) // (2 * lane_f * itemsize)) // 128 * 128)
    tb_max = min(_round_up(max_batch_tile, 128), vmem_cap_tb)
    if B >= 2 * tb_max:
        TB = tb_max
    elif B > 128:
        # Keep the grid at >= 2 steps so v7x's two TensorCores both get work
        # via dimension_semantics=("parallel",).  No-op cost on v5e/v6e.
        TB = min(_round_up(pl.cdiv(B, 2), 128), tb_max)
    else:
        TB = 128
    n_tiles = pl.cdiv(B, TB)
    b_pad = n_tiles * TB

    # fc1's weight is cast once (tiny (H, F) array) to the observation dtype so
    # bf16 observations feed the MXU directly; no-op for f32 observations.
    w1 = params["fc1_w"].astype(ob.dtype)
    b1 = params["fc1_b"]
    w2, b2 = params["fc2_w"], params["fc2_b"]
    w3, b3 = params["out_w"], params["out_b"]

    def resident(a):  # full-array block, constant index map -> stays in VMEM
        return pl.BlockSpec(a.shape, lambda i: (0, 0))

    # ---- VMEM budget (padded layout) + compiler params ----
    blocks = [((TB, F), ob.dtype),
              (w1.shape, w1.dtype), (b1.shape, b1.dtype),
              (w2.shape, w2.dtype), (b2.shape, b2.dtype),
              (w3.shape, w3.dtype), (b3.shape, b3.dtype),
              ((1, TB), jnp.float32)]
    vmem_need = 2 * sum(_vmem_block_bytes(s, d) for s, d in blocks) + (2 << 20)
    cp_kwargs = dict(dimension_semantics=("parallel",))
    if vmem_need > (16 << 20):  # above v5e's scoped default -> set explicitly
        cp_kwargs["vmem_limit_bytes"] = int(min(_round_up(vmem_need, 1 << 20),
                                                64 << 20))

    flops = 2 * B * (F * H + H * H + H)
    bytes_accessed = int(
        ob.size * itemsize + B * 4
        + sum(a.size * a.dtype.itemsize for a in (w1, b1, w2, b2, w3, b3)))

    out = pl.pallas_call(
        critic_kernel,
        out_shape=jax.ShapeDtypeStruct((1, b_pad), jnp.float32),
        grid=(n_tiles,),
        in_specs=[pl.BlockSpec((TB, F), lambda i: (i, 0)),
                  resident(w1), resident(b1),
                  resident(w2), resident(b2),
                  resident(w3), resident(b3)],
        out_specs=pl.BlockSpec((1, TB), lambda i: (0, i)),
        compiler_params=pltpu.CompilerParams(**cp_kwargs),
        cost_estimate=pl.CostEstimate(flops=flops, transcendentals=0,
                                      bytes_accessed=bytes_accessed),
    )(ob, w1, b1, w2, b2, w3, b3)

    return out[0, :B].reshape(B, 1)


def init_params(key, ob_space, hidden=32):
    """PyTorch-default Linear init (U(-1/sqrt(fan_in), +1/sqrt(fan_in))).

    Weights stay in PyTorch's (out_features, in_features) layout — exactly what
    the kernel's W @ x^T formulation wants — and biases are (out_features, 1)
    columns, so no per-call transposes/reshapes are needed.
    """
    ks = jax.random.split(key, 6)

    def lin(kw, kb, fan_in, fan_out):
        bound = 1.0 / jnp.sqrt(fan_in)
        w = jax.random.uniform(kw, (fan_out, fan_in), jnp.float32, -bound, bound)
        b = jax.random.uniform(kb, (fan_out, 1), jnp.float32, -bound, bound)
        return w, b

    fc1_w, fc1_b = lin(ks[0], ks[1], ob_space, hidden)
    fc2_w, fc2_b = lin(ks[2], ks[3], hidden, hidden)
    out_w, out_b = lin(ks[4], ks[5], hidden, 1)
    return {"fc1_w": fc1_w, "fc1_b": fc1_b,
            "fc2_w": fc2_w, "fc2_b": fc2_b,
            "out_w": out_w, "out_b": out_b}


def reference_forward(ob, p):
    """Pure-JAX reference matching the PyTorch module semantics."""
    h = jnp.maximum(ob @ p["fc1_w"].T + p["fc1_b"].T, 0.0)
    h = jnp.maximum(h @ p["fc2_w"].T + p["fc2_b"].T, 0.0)
    return h @ p["out_w"].T + p["out_b"].T


if __name__ == "__main__":
    key = jax.random.PRNGKey(0)
    k_param, k_ob, k_ob2 = jax.random.split(key, 3)

    batch, ob_space, hidden = 8, 16, 32
    params = init_params(k_param, ob_space, hidden)

    # --- small f32 batch (shapes implied by the module) ---
    ob = jax.random.normal(k_ob, (batch, ob_space), jnp.float32)
    out = jax.block_until_ready(critic_forward(ob, params))
    ref = reference_forward(ob, params)
    assert out.shape == (batch, 1), out.shape
    assert jnp.allclose(out, ref, atol=1e-5, rtol=1e-5)

    # --- bf16 observations: fed straight into the MXU (bf16 fc1 weights, f32
    #     accumulation); compare against a reference using the same quantized
    #     observation and fc1 weight ---
    ob_bf16 = ob.astype(jnp.bfloat16)
    out_bf16 = jax.block_until_ready(critic_forward(ob_bf16, params))
    p_q = dict(params)
    p_q["fc1_w"] = params["fc1_w"].astype(jnp.bfloat16).astype(jnp.float32)
    ref_bf16 = reference_forward(ob_bf16.astype(jnp.float32), p_q)
    assert jnp.allclose(out_bf16, ref_bf16, atol=1e-4, rtol=1e-4)

    # --- multi-tile grid (>= 2 steps for v7x) with a partial trailing tile ---
    mid_b = 300  # TB = round_up(150, 128) = 256 -> 2 tiles, last one partial
    ob_mid = jax.random.normal(k_ob2, (mid_b, ob_space), jnp.float32)
    out_mid = jax.block_until_ready(critic_forward(ob_mid, params))
    ref_mid = reference_forward(ob_mid, params)
    assert out_mid.shape == (mid_b, 1)
    assert jnp.allclose(out_mid, ref_mid, atol=1e-4, rtol=1e-4)

    print("KERNEL_OK")
</pallas_src>

<mosaic_0001>
module attributes {stable_mosaic.version = 11 : i64} {
  func.func @critic_kernel(%arg0: i32, %arg1: memref<128x16xf32, #tpu.memory_space<vmem>>, %arg2: memref<32x16xf32, #tpu.memory_space<vmem>>, %arg3: memref<32x1xf32, #tpu.memory_space<vmem>>, %arg4: memref<32x32xf32, #tpu.memory_space<vmem>>, %arg5: memref<32x1xf32, #tpu.memory_space<vmem>>, %arg6: memref<1x32xf32, #tpu.memory_space<vmem>>, %arg7: memref<1x1xf32, #tpu.memory_space<vmem>>, %arg8: memref<1x128xf32, #tpu.memory_space<vmem>>) attributes {dimension_semantics = [#tpu.dimension_semantics<parallel>], iteration_bounds = array<i64: 1>, scalar_prefetch = 0 : i64, scratch_operands = 0 : i64, tpu.core_type = #tpu.core_type<tc>, window_params = [{transform_indices = @transform_0, window_bounds = array<i64: 128, 16>}, {pipeline_mode = #tpu.pipeline_mode<synchronous>, transform_indices = @transform_1, window_bounds = array<i64: 32, 16>}, {pipeline_mode = #tpu.pipeline_mode<synchronous>, transform_indices = @transform_2, window_bounds = array<i64: 32, 1>}, {pipeline_mode = #tpu.pipeline_mode<synchronous>, transform_indices = @transform_3, window_bounds = array<i64: 32, 32>}, {pipeline_mode = #tpu.pipeline_mode<synchronous>, transform_indices = @transform_4, window_bounds = array<i64: 32, 1>}, {pipeline_mode = #tpu.pipeline_mode<synchronous>, transform_indices = @transform_5, window_bounds = array<i64: 1, 32>}, {pipeline_mode = #tpu.pipeline_mode<synchronous>, transform_indices = @transform_6, window_bounds = array<i64: 1, 1>}, {transform_indices = @transform_7, window_bounds = array<i64: 1, 128>}]} {
    %c0 = arith.constant 0 : index
    %c0_0 = arith.constant 0 : index
    %0 = vector.load %arg1[%c0, %c0_0] : memref<128x16xf32, #tpu.memory_space<vmem>>, vector<128x16xf32>
    %c0_1 = arith.constant 0 : index
    %c0_2 = arith.constant 0 : index
    %1 = vector.load %arg2[%c0_1, %c0_2] : memref<32x16xf32, #tpu.memory_space<vmem>>, vector<32x16xf32>
    %cst = arith.constant dense<0.000000e+00> : vector<32x128xf32>
    %2 = tpu.matmul %1, %0, %cst {dimension_numbers = #tpu.dot_dimension_numbers<[1], [1], [0], [0], [0, 0, 1, 0], [], []>} : vector<32x16xf32>, vector<128x16xf32>, vector<32x128xf32> -> vector<32x128xf32>
    %c0_3 = arith.constant 0 : index
    %c0_4 = arith.constant 0 : index
    %3 = vector.load %arg3[%c0_3, %c0_4] : memref<32x1xf32, #tpu.memory_space<vmem>>, vector<32x1xf32>
    %4 = vector.broadcast %3 : vector<32x1xf32> to vector<32x128xf32>
    %5 = arith.addf %2, %4 : vector<32x128xf32>
    %cst_5 = arith.constant 0.000000e+00 : f32
    %6 = vector.broadcast %cst_5 : f32 to vector<32x128xf32>
    %7 = arith.maximumf %5, %6 : vector<32x128xf32>
    %c0_6 = arith.constant 0 : index
    %c0_7 = arith.constant 0 : index
    %8 = vector.load %arg4[%c0_6, %c0_7] : memref<32x32xf32, #tpu.memory_space<vmem>>, vector<32x32xf32>
    %cst_8 = arith.constant dense<0.000000e+00> : vector<32x128xf32>
    %9 = tpu.matmul %8, %7, %cst_8 {dimension_numbers = #tpu.dot_dimension_numbers<[1], [0], [0], [1], [0, 0, 1, 1], [], []>} : vector<32x32xf32>, vector<32x128xf32>, vector<32x128xf32> -> vector<32x128xf32>
    %c0_9 = arith.constant 0 : index
    %c0_10 = arith.constant 0 : index
    %10 = vector.load %arg5[%c0_9, %c0_10] : memref<32x1xf32, #tpu.memory_space<vmem>>, vector<32x1xf32>
    %11 = vector.broadcast %10 : vector<32x1xf32> to vector<32x128xf32>
    %12 = arith.addf %9, %11 : vector<32x128xf32>
    %cst_11 = arith.constant 0.000000e+00 : f32
    %13 = vector.broadcast %cst_11 : f32 to vector<32x128xf32>
    %14 = arith.maximumf %12, %13 : vector<32x128xf32>
    %c0_12 = arith.constant 0 : index
    %c0_13 = arith.constant 0 : index
    %15 = vector.load %arg6[%c0_12, %c0_13] : memref<1x32xf32, #tpu.memory_space<vmem>>, vector<1x32xf32>
    %cst_14 = arith.constant dense<0.000000e+00> : vector<1x128xf32>
    %16 = tpu.matmul %15, %14, %cst_14 {dimension_numbers = #tpu.dot_dimension_numbers<[1], [0], [0], [1], [0, 0, 1, 1], [], []>} : vector<1x32xf32>, vector<32x128xf32>, vector<1x128xf32> -> vector<1x128xf32>
    %c0_15 = arith.constant 0 : index
    %c0_16 = arith.constant 0 : index
    %17 = vector.load %arg7[%c0_15, %c0_16] : memref<1x1xf32, #tpu.memory_space<vmem>>, vector<1x1xf32>
    %18 = vector.broadcast %17 : vector<1x1xf32> to vector<1x128xf32>
    %19 = arith.addf %16, %18 : vector<1x128xf32>
    %c0_17 = arith.constant 0 : index
    %c0_18 = arith.constant 0 : index
    %20 = vector.load %arg8[%c0_17, %c0_18] : memref<1x128xf32, #tpu.memory_space<vmem>>, vector<1x128xf32>
    tpu.vector_store %arg8[%c0_17, %c0_18], %19 {strides = array<i32>} : memref<1x128xf32, #tpu.memory_space<vmem>>, vector<1x128xf32>,
    return
  }
  func.func @transform_0(%arg0: i32) -> (i32, i32) {
    %c0_i32 = arith.constant 0 : i32
    %c0_i32_0 = arith.constant 0 : i32
    return %arg0, %c0_i32 : i32, i32
  }
  func.func @transform_1(%arg0: i32) -> (i32, i32) {
    %c0_i32 = arith.constant 0 : i32
    %c0_i32_0 = arith.constant 0 : i32
    %c0_i32_1 = arith.constant 0 : i32
    return %c0_i32, %c0_i32_0 : i32, i32
  }
  func.func @transform_2(%arg0: i32) -> (i32, i32) {
    %c0_i32 = arith.constant 0 : i32
    %c0_i32_0 = arith.constant 0 : i32
    %c0_i32_1 = arith.constant 0 : i32
    return %c0_i32, %c0_i32_0 : i32, i32
  }
  func.func @transform_3(%arg0: i32) -> (i32, i32) {
    %c0_i32 = arith.constant 0 : i32
    %c0_i32_0 = arith.constant 0 : i32
    %c0_i32_1 = arith.constant 0 : i32
    return %c0_i32, %c0_i32_0 : i32, i32
  }
  func.func @transform_4(%arg0: i32) -> (i32, i32) {
    %c0_i32 = arith.constant 0 : i32
    %c0_i32_0 = arith.constant 0 : i32
    %c0_i32_1 = arith.constant 0 : i32
    return %c0_i32, %c0_i32_0 : i32, i32
  }
  func.func @transform_5(%arg0: i32) -> (i32, i32) {
    %c0_i32 = arith.constant 0 : i32
    %c0_i32_0 = arith.constant 0 : i32
    %c0_i32_1 = arith.constant 0 : i32
    return %c0_i32, %c0_i32_0 : i32, i32
  }
  func.func @transform_6(%arg0: i32) -> (i32, i32) {
    %c0_i32 = arith.constant 0 : i32
    %c0_i32_0 = arith.constant 0 : i32
    %c0_i32_1 = arith.constant 0 : i32
    return %c0_i32, %c0_i32_0 : i32, i32
  }
  func.func @transform_7(%arg0: i32) -> (i32, i32) {
    %c0_i32 = arith.constant 0 : i32
    %c0_i32_0 = arith.constant 0 : i32
    return %c0_i32, %arg0 : i32, i32
  }
}

</mosaic_0001>

<llo_original>
// kernel: tpu_custom_call.1
$region0: #{tpu_custom_call.1}
  #allocation0 [shape = 'u32[]', space=smem, size = 0x4, offset = 0x4, fixed_abs, tag = 'smem constant byte address 0x4 - core index']
  #allocation1 [shape = 'u32[144,128]{1,0:T(1,128)}', space=vmem, size = 0x12000, scoped, tag = 'internal scratch']
  #allocation2 [shape = 'f32[1,1]{1,0:T(1,128)S(1)}', space=vmem, size = 0x200, scoped, tag = 'scoped memory for tpu_custom_call.1']
  %s0 = inlined_call_operand.vmem [shape: f32[8,16], index: 0, kind: input, shape index: {}]
  %s1 = inlined_call_operand.vmem [shape: f32[32,16], index: 1, kind: input, shape index: {}]
  %s2 = inlined_call_operand.vmem [shape: f32[32,1], index: 2, kind: input, shape index: {}]
  %s3 = inlined_call_operand.vmem [shape: f32[32,32], index: 3, kind: input, shape index: {}]
  %s4 = inlined_call_operand.vmem [shape: f32[32,1], index: 4, kind: input, shape index: {}]
  %s5 = inlined_call_operand.vmem [shape: f32[1,32], index: 5, kind: input, shape index: {}]
  %s6 = inlined_call_operand.<no memory space> [shape: f32[1,1], index: 6, kind: input, shape index: {}]
  %s7 = inlined_call_operand.hbm [shape: f32[1,128], index: 7, kind: output, shape index: {}]
  %s8 = sld [smem:[#allocation0]]
  $region38: #{tpu_custom_call.1} parent=0
    _
  %s10 = ssub.s32 1, %s8
  %s11 = scalar_select 0, %s10, %s8
  %v12 = vstv %s6
  %13 = vst [vmem:[#allocation2] sm:$0x1] %v12
  $region1: #{tpu_custom_call.1} parent=0
    #allocation3 [shape = 'u8[512]{0}', space=vmem, size = 0x400, scoped, tag = 'output window, operand 0, single buffered']
    #allocation4 [shape = 's32[1]{0}', space=sflag, size = 0x4, scoped, tag = 'scoped memory for tpu_custom_call.1']
    %14 = vsyncpa [#allocation4], 0
    // Predicated region
    $region2: #{tpu_custom_call.1} parent=1 // pred_check
      _
    $region3: #{tpu_custom_call.1} parent=1 // pred_check_branch
      %16 = sbr.rel (0) target = $region5
    $region4: #{tpu_custom_call.1} parent=1 // pred_region
      _
    $region5: #{tpu_custom_call.1} parent=1 // pred_fallthru
      _
    // Predicated region
    $region6: #{tpu_custom_call.1} parent=1 // pred_check
      _
    $region7: #{tpu_custom_call.1} parent=1 // pred_check_branch
      %18 = sbr.rel (0) target = $region9
    $region8: #{tpu_custom_call.1} parent=1 // pred_region
      _
    $region9: #{tpu_custom_call.1} parent=1 // pred_fallthru
      _
    // Predicated region
    $region10: #{tpu_custom_call.1} parent=1 // pred_check
      _
    $region11: #{tpu_custom_call.1} parent=1 // pred_check_branch
      %20 = sbr.rel (0) target = $region13
    $region12: #{tpu_custom_call.1} parent=1 // pred_region
      _
    $region13: #{tpu_custom_call.1} parent=1 // pred_fallthru
      _
    // Predicated region
    $region14: #{tpu_custom_call.1} parent=1 // pred_check
      _
    $region15: #{tpu_custom_call.1} parent=1 // pred_check_branch
      %22 = sbr.rel (0) target = $region17
    $region16: #{tpu_custom_call.1} parent=1 // pred_region
      _
    $region17: #{tpu_custom_call.1} parent=1 // pred_fallthru
      _
    // Predicated region
    $region18: #{tpu_custom_call.1} parent=1 // pred_check
      _
    $region19: #{tpu_custom_call.1} parent=1 // pred_check_branch
      %24 = sbr.rel (0) target = $region21
    $region20: #{tpu_custom_call.1} parent=1 // pred_region
      _
    $region21: #{tpu_custom_call.1} parent=1 // pred_fallthru
      _
    // Predicated region
    $region22: #{tpu_custom_call.1} parent=1 // pred_check
      _
    $region23: #{tpu_custom_call.1} parent=1 // pred_check_branch
      %26 = sbr.rel (0) target = $region25
    $region24: #{tpu_custom_call.1} parent=1 // pred_region
      _
    $region25: #{tpu_custom_call.1} parent=1 // pred_fallthru
      _
    // Predicated region
    $region26: #{tpu_custom_call.1} parent=1 // pred_check
      _
    $region27: #{tpu_custom_call.1} parent=1 // pred_check_branch
      %28 = sbr.rel (0) target = $region29
    $region28: #{tpu_custom_call.1} parent=1 // pred_region
      _
    $region29: #{tpu_custom_call.1} parent=1 // pred_fallthru
      _
    %v29 = vld [vmem:[%s0] sm:$0xff]
    %v30 = vld [vmem:[%s0 + $0x8] sm:$0xff]
    %v31 = vld [vmem:[%s0 + $0x10] sm:$0xff]
    %v32 = vld [vmem:[%s0 + $0x18] sm:$0xff]
    %v33 = vld [vmem:[%s0 + $0x20] sm:$0xff]
    %v34 = vld [vmem:[%s0 + $0x28] sm:$0xff]
    %v35 = vld [vmem:[%s0 + $0x30] sm:$0xff]
    %v36 = vld [vmem:[%s0 + $0x38] sm:$0xff]
    %v37 = vld [vmem:[%s0 + $0x40] sm:$0xff]
    %v38 = vld [vmem:[%s0 + $0x48] sm:$0xff]
    %v39 = vld [vmem:[%s0 + $0x50] sm:$0xff]
    %v40 = vld [vmem:[%s0 + $0x58] sm:$0xff]
    %v41 = vld [vmem:[%s0 + $0x60] sm:$0xff]
    %v42 = vld [vmem:[%s0 + $0x68] sm:$0xff]
    %v43 = vld [vmem:[%s0 + $0x70] sm:$0xff]
    %v44 = vld [vmem:[%s0 + $0x78] sm:$0xff]
    %v45 = vld [vmem:[%s1] sm:$0xff]
    %v46 = vld [vmem:[%s1 + $0x8] sm:$0xff]
    %v47 = vld [vmem:[%s1 + $0x10] sm:$0xff]
    %v48 = vld [vmem:[%s1 + $0x18] sm:$0xff]
    %v49 = vld [vmem:[%s2] sm:$0xff]
    %v50 = vld [vmem:[%s2 + $0x8] sm:$0xff]
    %v51 = vld [vmem:[%s2 + $0x10] sm:$0xff]
    %v52 = vld [vmem:[%s2 + $0x18] sm:$0xff]
    %54 = vset.pattern.permute.xlu0 0
    %55 = vperm.xlu0 %54, %v49
    %v56 = vpop.permute.xlu0 %55
    %59 = vset.pattern.permute.xlu0 0
    %60 = vperm.xlu0 %59, %v50
    %v61 = vpop.permute.xlu0 %60
    %64 = vset.pattern.permute.xlu0 0
    %65 = vperm.xlu0 %64, %v51
    %v66 = vpop.permute.xlu0 %65
    %69 = vset.pattern.permute.xlu0 0
    %70 = vperm.xlu0 %69, %v52
    %v71 = vpop.permute.xlu0 %70
    %vm73 = vcmask 130048
    %v75 = vsel %vm73, %v45, 0
    %v78 = vsel %vm73, %v46, 0
    %v81 = vsel %vm73, %v47, 0
    %v84 = vsel %vm73, %v48, 0
    %v87 = vsel %vm73, %v29, 0
    %v90 = vsel %vm73, %v30, 0
    %v93 = vsel %vm73, %v31, 0
    %v96 = vsel %vm73, %v32, 0
    %v99 = vsel %vm73, %v33, 0
    %v102 = vsel %vm73, %v34, 0
    %v105 = vsel %vm73, %v35, 0
    %v108 = vsel %vm73, %v36, 0
    %v111 = vsel %vm73, %v37, 0
    %v114 = vsel %vm73, %v38, 0
    %v117 = vsel %vm73, %v39, 0
    %v120 = vsel %vm73, %v40, 0
    %v123 = vsel %vm73, %v41, 0
    %v126 = vsel %vm73, %v42, 0
    %v129 = vsel %vm73, %v43, 0
    %v132 = vsel %vm73, %v44, 0
    %134 = vmatprep.subr.mxu0 0.0
    %135 = vmatpush1.xpose.msra.mxu0 %v132
    %136 = vmatprep.subr.mxu0 0.0
    %137 = vmatpush1.xpose.msra.mxu0 %v129
    %138 = vmatprep.subr.mxu0 0.0
    %139 = vmatpush1.xpose.msra.mxu0 %v126
    %140 = vmatprep.subr.mxu0 0.0
    %141 = vmatpush1.xpose.msra.mxu0 %v123
    %142 = vmatprep.subr.mxu0 0.0
    %143 = vmatpush1.xpose.msra.mxu0 %v120
    %144 = vmatprep.subr.mxu0 0.0
    %145 = vmatpush1.xpose.msra.mxu0 %v117
    %146 = vmatprep.subr.mxu0 0.0
    %147 = vmatpush1.xpose.msra.mxu0 %v114
    %148 = vmatprep.subr.mxu0 0.0
    %149 = vmatpush1.xpose.msra.mxu0 %v111
    %150 = vmatprep.subr.mxu0 0.0
    %151 = vmatpush1.xpose.msra.mxu0 %v108
    %152 = vmatprep.subr.mxu0 0.0
    %153 = vmatpush1.xpose.msra.mxu0 %v105
    %154 = vmatprep.subr.mxu0 0.0
    %155 = vmatpush1.xpose.msra.mxu0 %v102
    %156 = vmatprep.subr.mxu0 0.0
    %157 = vmatpush1.xpose.msra.mxu0 %v99
    %158 = vmatprep.subr.mxu0 0.0
    %159 = vmatpush1.xpose.msra.mxu0 %v96
    %160 = vmatprep.subr.mxu0 0.0
    %161 = vmatpush1.xpose.msra.mxu0 %v93
    %162 = vmatprep.subr.mxu0 0.0
    %163 = vmatpush1.xpose.msra.mxu0 %v90
    %164 = vmatprep.subr.mxu0 0.0
    %165 = vmatpush1.xpose.msra.mxu0 %v87
    %166 = vmatprep.subr.mxu0 0.0
    %167 = vmatpush2.xpose.msra.mxu0 0.0
    %168 = vmatprep.subr.mxu0 0.0
    %169 = vmatpush2.xpose.msra.mxu0 0.0
    %170 = vmatprep.subr.mxu0 0.0
    %171 = vmatpush2.xpose.msra.mxu0 0.0
    %172 = vmatprep.subr.mxu0 0.0
    %173 = vmatpush2.xpose.msra.mxu0 0.0
    %174 = vmatprep.subr.mxu0 0.0
    %175 = vmatpush2.xpose.msra.mxu0 0.0
    %176 = vmatprep.subr.mxu0 0.0
    %177 = vmatpush2.xpose.msra.mxu0 0.0
    %178 = vmatprep.subr.mxu0 0.0
    %179 = vmatpush2.xpose.msra.mxu0 0.0
    %180 = vmatprep.subr.mxu0 0.0
    %181 = vmatpush2.xpose.msra.mxu0 0.0
    %182 = vmatprep.subr.mxu0 0.0
    %183 = vmatpush2.xpose.msra.mxu0 0.0
    %184 = vmatprep.subr.mxu0 0.0
    %185 = vmatpush2.xpose.msra.mxu0 0.0
    %186 = vmatprep.subr.mxu0 0.0
    %187 = vmatpush2.xpose.msra.mxu0 0.0
    %188 = vmatprep.subr.mxu0 0.0
    %189 = vmatpush2.xpose.msra.mxu0 0.0
    %190 = vmatprep.subr.mxu0 0.0
    %191 = vmatpush2.xpose.msra.mxu0 0.0
    %192 = vmatprep.subr.mxu0 0.0
    %193 = vmatpush2.xpose.msra.mxu0 0.0
    %194 = vmatprep.subr.mxu0 0.0
    %195 = vmatpush2.xpose.msra.mxu0 0.0
    %196 = vmatprep.subr.mxu0 0.0
    %197 = vmatpush2.xpose.msra.mxu0 0.0
    %198 = vmatprep.mubr.f32.mxu0 0.0
    %199 = vmatmul.mubr.f32.gmra.mxu0 %v75
    %v200 = vpop.f32.mrf.mxu0
    %v201 = vadd.f32 %v56, %v200
    %v202 = vpop.f32.mrf.mxu0
    %203 = vmatprep.mubr.f32.mxu0 0.0
    %204 = vmatmul.mubr.f32.gmra.mxu0 %v78
    %v205 = vpop.f32.mrf.mxu0
    %v206 = vadd.f32 %v61, %v205
    %v207 = vpop.f32.mrf.mxu0
    %208 = vmatprep.mubr.f32.mxu0 0.0
    %209 = vmatmul.mubr.f32.gmra.mxu0 %v81
    %v210 = vpop.f32.mrf.mxu0
    %v211 = vadd.f32 %v66, %v210
    %v212 = vpop.f32.mrf.mxu0
    %213 = vmatprep.mubr.f32.mxu0 0.0
    %214 = vmatmul.mubr.f32.gmra.mxu0 %v84
    %v215 = vpop.f32.mrf.mxu0
    %v216 = vadd.f32 %v71, %v215
    %v217 = vpop.f32.mrf.mxu0
    %218 = vdwg.mxu0
    %v219 = vmax.f32 %v201, 0.0
    %v220 = vmax.f32 %v206, 0.0
    %v221 = vmax.f32 %v211, 0.0
    %v222 = vmax.f32 %v216, 0.0
    %v223 = vld [vmem:[%s3] sm:$0xff]
    %v224 = vld [vmem:[%s3 + $0x8] sm:$0xff]
    %v225 = vld [vmem:[%s3 + $0x10] sm:$0xff]
    %v226 = vld [vmem:[%s3 + $0x18] sm:$0xff]
    %v227 = vld [vmem:[%s4] sm:$0xff]
    %v228 = vld [vmem:[%s4 + $0x8] sm:$0xff]
    %v229 = vld [vmem:[%s4 + $0x10] sm:$0xff]
    %v230 = vld [vmem:[%s4 + $0x18] sm:$0xff]
    %232 = vset.pattern.permute.xlu0 0
    %233 = vperm.xlu0 %232, %v227
    %v234 = vpop.permute.xlu0 %233
    %237 = vset.pattern.permute.xlu0 0
    %238 = vperm.xlu0 %237, %v228
    %v239 = vpop.permute.xlu0 %238
    %242 = vset.pattern.permute.xlu0 0
    %243 = vperm.xlu0 %242, %v229
    %v244 = vpop.permute.xlu0 %243
    %247 = vset.pattern.permute.xlu0 0
    %248 = vperm.xlu0 %247, %v230
    %v249 = vpop.permute.xlu0 %248
    %vm251 = vcmask 261120
    %v253 = vsel %vm251, %v223, 0
    %v256 = vsel %vm251, %v224, 0
    %v259 = vsel %vm251, %v225, 0
    %v262 = vsel %vm251, %v226, 0
    %264 = vmatprep.subr.mxu0 0.0
    %265 = vmatpush1.msra.mxu0 0.0
    %266 = vmatprep.subr.mxu0 0.0
    %267 = vmatpush1.msra.mxu0 0.0
    %268 = vmatprep.subr.mxu0 0.0
    %269 = vmatpush1.msra.mxu0 0.0
    %270 = vmatprep.subr.mxu0 0.0
    %271 = vmatpush1.msra.mxu0 0.0
    %272 = vmatprep.subr.mxu0 0.0
    %273 = vmatpush1.msra.mxu0 0.0
    %274 = vmatprep.subr.mxu0 0.0
    %275 = vmatpush1.msra.mxu0 0.0
    %276 = vmatprep.subr.mxu0 0.0
    %277 = vmatpush1.msra.mxu0 0.0
    %278 = vmatprep.subr.mxu0 0.0
    %279 = vmatpush1.msra.mxu0 0.0
    %280 = vmatprep.subr.mxu0 0.0
    %281 = vmatpush1.msra.mxu0 0.0
    %282 = vmatprep.subr.mxu0 0.0
    %283 = vmatpush1.msra.mxu0 0.0
    %284 = vmatprep.subr.mxu0 0.0
    %285 = vmatpush1.msra.mxu0 0.0
    %286 = vmatprep.subr.mxu0 0.0
    %287 = vmatpush1.msra.mxu0 0.0
    %288 = vmatprep.subr.mxu0 0.0
    %289 = vmatpush1.msra.mxu0 %v222
    %290 = vmatprep.subr.mxu0 0.0
    %291 = vmatpush1.msra.mxu0 %v221
    %292 = vmatprep.subr.mxu0 0.0
    %293 = vmatpush1.msra.mxu0 %v220
    %294 = vmatprep.subr.mxu0 0.0
    %295 = vmatpush1.msra.mxu0 %v219
    %296 = vmatprep.subr.mxu0 0.0
    %297 = vmatpush2.msra.mxu0 0.0
    %298 = vmatprep.subr.mxu0 0.0
    %299 = vmatpush2.msra.mxu0 0.0
    %300 = vmatprep.subr.mxu0 0.0
    %301 = vmatpush2.msra.mxu0 0.0
    %302 = vmatprep.subr.mxu0 0.0
    %303 = vmatpush2.msra.mxu0 0.0
    %304 = vmatprep.subr.mxu0 0.0
    %305 = vmatpush2.msra.mxu0 0.0
    %306 = vmatprep.subr.mxu0 0.0
    %307 = vmatpush2.msra.mxu0 0.0
    %308 = vmatprep.subr.mxu0 0.0
    %309 = vmatpush2.msra.mxu0 0.0
    %310 = vmatprep.subr.mxu0 0.0
    %311 = vmatpush2.msra.mxu0 0.0
    %312 = vmatprep.subr.mxu0 0.0
    %313 = vmatpush2.msra.mxu0 0.0
    %314 = vmatprep.subr.mxu0 0.0
    %315 = vmatpush2.msra.mxu0 0.0
    %316 = vmatprep.subr.mxu0 0.0
    %317 = vmatpush2.msra.mxu0 0.0
    %318 = vmatprep.subr.mxu0 0.0
    %319 = vmatpush2.msra.mxu0 0.0
    %320 = vmatprep.subr.mxu0 0.0
    %321 = vmatpush2.msra.mxu0 0.0
    %322 = vmatprep.subr.mxu0 0.0
    %323 = vmatpush2.msra.mxu0 0.0
    %324 = vmatprep.subr.mxu0 0.0
    %325 = vmatpush2.msra.mxu0 0.0
    %326 = vmatprep.subr.mxu0 0.0
    %327 = vmatpush2.msra.mxu0 0.0
    %328 = vmatprep.mubr.f32.mxu0 0.0
    %329 = vmatmul.mubr.f32.gmra.mxu0 %v253
    %v330 = vpop.f32.mrf.mxu0
    %v331 = vadd.f32 %v234, %v330
    %v332 = vpop.f32.mrf.mxu0
    %333 = vmatprep.mubr.f32.mxu0 0.0
    %334 = vmatmul.mubr.f32.gmra.mxu0 %v256
    %v335 = vpop.f32.mrf.mxu0
    %v336 = vadd.f32 %v239, %v335
    %v337 = vpop.f32.mrf.mxu0
    %338 = vmatprep.mubr.f32.mxu0 0.0
    %339 = vmatmul.mubr.f32.gmra.mxu0 %v259
    %v340 = vpop.f32.mrf.mxu0
    %v341 = vadd.f32 %v244, %v340
    %v342 = vpop.f32.mrf.mxu0
    %343 = vmatprep.mubr.f32.mxu0 0.0
    %344 = vmatmul.mubr.f32.gmra.mxu0 %v262
    %v345 = vpop.f32.mrf.mxu0
    %v346 = vadd.f32 %v249, %v345
    %v347 = vpop.f32.mrf.mxu0
    %348 = vdwg.mxu0
    %v349 = vmax.f32 %v331, 0.0
    %v350 = vmax.f32 %v336, 0.0
    %v351 = vmax.f32 %v341, 0.0
    %v352 = vmax.f32 %v346, 0.0
    %v353 = vld [vmem:[%s5] sm:$0x1]
    %v354 = vld [vmem:[#allocation2] sm:$0x1]
    %356 = vset.pattern.permute.xlu0 0
    %357 = vperm.xlu0 %356, %v354
    %v358 = vpop.permute.xlu0 %357
    %v360 = vlaneseq
    %v361 = vshrl.u32 %v360, 7
    %v362 = vsub.s32 0, %v361
    %v363 = vrot.slane %v358, %v362
    %v365 = vsel %vm251, %v353, 0
    %367 = vmatprep.subr.mxu0 0.0
    %368 = vmatpush1.msra.mxu0 0.0
    %369 = vmatprep.subr.mxu0 0.0
    %370 = vmatpush1.msra.mxu0 0.0
    %371 = vmatprep.subr.mxu0 0.0
    %372 = vmatpush1.msra.mxu0 0.0
    %373 = vmatprep.subr.mxu0 0.0
    %374 = vmatpush1.msra.mxu0 0.0
    %375 = vmatprep.subr.mxu0 0.0
    %376 = vmatpush1.msra.mxu0 0.0
    %377 = vmatprep.subr.mxu0 0.0
    %378 = vmatpush1.msra.mxu0 0.0
    %379 = vmatprep.subr.mxu0 0.0
    %380 = vmatpush1.msra.mxu0 0.0
    %381 = vmatprep.subr.mxu0 0.0
    %382 = vmatpush1.msra.mxu0 0.0
    %383 = vmatprep.subr.mxu0 0.0
    %384 = vmatpush1.msra.mxu0 0.0
    %385 = vmatprep.subr.mxu0 0.0
    %386 = vmatpush1.msra.mxu0 0.0
    %387 = vmatprep.subr.mxu0 0.0
    %388 = vmatpush1.msra.mxu0 0.0
    %389 = vmatprep.subr.mxu0 0.0
    %390 = vmatpush1.msra.mxu0 0.0
    %391 = vmatprep.subr.mxu0 0.0
    %392 = vmatpush1.msra.mxu0 %v352
    %393 = vmatprep.subr.mxu0 0.0
    %394 = vmatpush1.msra.mxu0 %v351
    %395 = vmatprep.subr.mxu0 0.0
    %396 = vmatpush1.msra.mxu0 %v350
    %397 = vmatprep.subr.mxu0 0.0
    %398 = vmatpush1.msra.mxu0 %v349
    %399 = vmatprep.subr.mxu0 0.0
    %400 = vmatpush2.msra.mxu0 0.0
    %401 = vmatprep.subr.mxu0 0.0
    %402 = vmatpush2.msra.mxu0 0.0
    %403 = vmatprep.subr.mxu0 0.0
    %404 = vmatpush2.msra.mxu0 0.0
    %405 = vmatprep.subr.mxu0 0.0
    %406 = vmatpush2.msra.mxu0 0.0
    %407 = vmatprep.subr.mxu0 0.0
    %408 = vmatpush2.msra.mxu0 0.0
    %409 = vmatprep.subr.mxu0 0.0
    %410 = vmatpush2.msra.mxu0 0.0
    %411 = vmatprep.subr.mxu0 0.0
    %412 = vmatpush2.msra.mxu0 0.0
    %413 = vmatprep.subr.mxu0 0.0
    %414 = vmatpush2.msra.mxu0 0.0
    %415 = vmatprep.subr.mxu0 0.0
    %416 = vmatpush2.msra.mxu0 0.0
    %417 = vmatprep.subr.mxu0 0.0
    %418 = vmatpush2.msra.mxu0 0.0
    %419 = vmatprep.subr.mxu0 0.0
    %420 = vmatpush2.msra.mxu0 0.0
    %421 = vmatprep.subr.mxu0 0.0
    %422 = vmatpush2.msra.mxu0 0.0
    %423 = vmatprep.subr.mxu0 0.0
    %424 = vmatpush2.msra.mxu0 0.0
    %425 = vmatprep.subr.mxu0 0.0
    %426 = vmatpush2.msra.mxu0 0.0
    %427 = vmatprep.subr.mxu0 0.0
    %428 = vmatpush2.msra.mxu0 0.0
    %429 = vmatprep.subr.mxu0 0.0
    %430 = vmatpush2.msra.mxu0 0.0
    %431 = vmatprep.mubr.f32.mxu0 0.0
    %432 = vmatmul.mubr.f32.gmra.mxu0 %v365
    %v433 = vpop.f32.mrf.mxu0
    %v434 = vadd.f32 %v363, %v433
    %v435 = vpop.f32.mrf.mxu0
    %436 = vdwg.mxu0
    %437 = vst [vmem:[#allocation3] sm:$0x1] %v434
    // Predicated region
    $region30: #{tpu_custom_call.1} parent=1 // pred_check
      _
    $region31: #{tpu_custom_call.1} parent=1 // pred_check_branch
      %439 = sbr.rel (0) target = $region33
    $region32: #{tpu_custom_call.1} parent=1 // pred_region
      %s441 = ssub.s32 16, 16
      %442 = vsyncadd [#allocation4], %s441
      %s444 = sshll.u32 [#allocation3], 4
      %s445 = int_to_ptr.vmem [resolvable:$true] %s444
      %447 = dma.vmem_to_hbm [thread:$0]  %s445, 16, %s7, [#allocation4]
    $region33: #{tpu_custom_call.1} parent=1 // pred_fallthru
      _
    // Predicated region
    $region34: #{tpu_custom_call.1} parent=1 // pred_check
      _
    $region35: #{tpu_custom_call.1} parent=1 // pred_check_branch
      %449 = sbr.rel (0) target = $region37
    $region36: #{tpu_custom_call.1} parent=1 // pred_region
      %450 = dma.done [#allocation4], 16
    $region37: #{tpu_custom_call.1} parent=1 // pred_fallthru
      _
    %451 = vsyncpa [#allocation4], 1

</llo_original>
